<compile_context>
chip_gen: v7x
topology: tpu7x:2x2x1
jax: 0.10.0
libtpu: 0.0.40
codegen_flags: <defaults>
</compile_context>

<pallas_src>
import functools
import math

import jax
import jax.numpy as jnp
from jax import lax
from jax.experimental import pallas as pl
from jax.experimental.pallas import tpu as pltpu

LANE = 128


def _round_up(x, m):
    return ((x + m - 1) // m) * m


# ----------------------------- Pallas kernel --------------------------------
def _fused_heads_kernel(x_ref, w_ref, b_ref, o_ref, *, head_sizes,
                        apply_softmax):
    # x_ref : (C, tile_hw)   NCHW activations (channels on sublanes)
    # w_ref : (C, N_pad)     packed weights (f32; padded cols are zero)
    # b_ref : (1, N_pad)     packed bias   (f32; padded cols are -inf)
    # o_ref : (tile_hw, N_pad)
    #
    # Contract the channel axis of BOTH operands so the MXU emits the result
    # directly in the lane-dense [tile_hw, N_pad] layout — no f32 XLU
    # transpose of the matmul result.  f32 x f32 also keeps the CPU/interpret
    # executor happy (BF16xBF16=F32 dots are unsupported there).
    logits = lax.dot_general(
        x_ref[...], w_ref[...],
        dimension_numbers=(((0,), (0,)), ((), ())),
        preferred_element_type=jnp.float32,
    ) + b_ref[...]

    if not apply_softmax:
        o_ref[...] = logits.astype(o_ref.dtype)
        return

    # Per-head softmax over disjoint class ranges with a SINGLE exp pass:
    # merge per-head maxes into one per-column max, exp once, then merge
    # per-head 1/sums into one per-column scale.
    col = lax.broadcasted_iota(jnp.int32, logits.shape, 1)
    neg_inf = jnp.float32(-jnp.inf)

    masks = []
    m_full = None
    start = 0
    for n in head_sizes:
        mask = (col >= start) & (col < start + n)
        masks.append(mask)
        m = jnp.max(jnp.where(mask, logits, neg_inf), axis=-1, keepdims=True)
        m_full = m if m_full is None else jnp.where(mask, m, m_full)
        start += n

    # Padded class columns carry a -inf bias, so exp(logits - m_full) == 0.
    e = jnp.exp(logits - m_full)

    inv_full = None
    for mask in masks:
        s = jnp.sum(jnp.where(mask, e, 0.0), axis=-1, keepdims=True)
        r = pl.reciprocal(s, approx=True)       # EUP slot, ~free
        inv_full = r if inv_full is None else jnp.where(mask, r, inv_full)

    o_ref[...] = (e * inv_full).astype(o_ref.dtype)


def fused_heads_pallas(x_nchw, w_packed, b_packed, head_sizes, *,
                       apply_softmax, out_dtype=jnp.bfloat16,
                       tile_hw_max=1024, target_tile=512):
    """Fused multi-head Linear(+bias)(+per-head softmax) on NCHW features.

    Returns the PADDED output [B, HW_pad, N_pad] (out_dtype); the caller
    slices valid rows / per-head class columns directly from it.
    """
    B, C, H, W = x_nchw.shape
    HW = H * W
    C2, N_pad = w_packed.shape
    assert C2 == C, (C2, C)
    assert N_pad % LANE == 0

    # ---- HW tile selection: keep tiles large and pad HW up to a tile
    # multiple instead of letting the tile collapse to 128 tokens.
    HW_lane = _round_up(HW, LANE)
    if HW_lane <= tile_hw_max:
        tile_hw = HW_lane
    elif HW_lane % tile_hw_max == 0:
        tile_hw = tile_hw_max
    else:
        tile_hw = target_tile
    HW_pad = _round_up(HW, tile_hw)
    n_hw_tiles = HW_pad // tile_hw

    # ---- make sure the grid has >= 2 programs so both v7x TensorCores get
    # work (only split if the half tile stays a positive lane multiple).
    if B * n_hw_tiles < 2:
        half = _round_up((HW + 1) // 2, LANE)
        if 0 < half < tile_hw:
            tile_hw = half
            HW_pad = _round_up(HW, tile_hw)
            n_hw_tiles = HW_pad // tile_hw

    x3 = x_nchw.reshape(B, C, HW)              # free reshape, no transpose
    if HW_pad != HW:
        x3 = jnp.pad(x3, ((0, 0), (0, 0), (0, HW_pad - HW)))

    out_bytes = jnp.dtype(out_dtype).itemsize
    cost = pl.CostEstimate(
        flops=2 * B * HW_pad * C * N_pad,
        transcendentals=(B * HW_pad * N_pad) if apply_softmax else 0,
        bytes_accessed=(x3.size * 4 + w_packed.size * 4 + b_packed.size * 4
                        + B * HW_pad * N_pad * out_bytes),
    )
    # Explicit VMEM budget: double-buffered x / w / out blocks plus headroom
    # for the in-kernel f32 temporaries; stays well under v7x's 64 MiB.
    vmem_bytes = (2 * C * tile_hw * 4 + 2 * C * N_pad * 4 + 2 * N_pad * 4
                  + 2 * tile_hw * N_pad * out_bytes
                  + 8 * tile_hw * N_pad * 4)
    vmem_limit = int(min(max(vmem_bytes, 16 << 20), 64 << 20))

    kernel = functools.partial(
        _fused_heads_kernel,
        head_sizes=tuple(int(n) for n in head_sizes),
        apply_softmax=apply_softmax,
    )
    return pl.pallas_call(
        kernel,
        out_shape=jax.ShapeDtypeStruct((B, HW_pad, N_pad), out_dtype),
        grid_spec=pltpu.PrefetchScalarGridSpec(
            num_scalar_prefetch=0,
            grid=(B, n_hw_tiles),
            in_specs=[
                pl.BlockSpec((None, C, tile_hw), lambda b, j: (b, 0, j)),
                pl.BlockSpec((C, N_pad), lambda b, j: (0, 0)),
                pl.BlockSpec((1, N_pad), lambda b, j: (0, 0)),
            ],
            out_specs=pl.BlockSpec((None, tile_hw, N_pad),
                                   lambda b, j: (b, j, 0)),
        ),
        compiler_params=pltpu.CompilerParams(
            dimension_semantics=("parallel", "parallel"),
            vmem_limit_bytes=vmem_limit),
        cost_estimate=cost,
    )(x3, w_packed, b_packed)


# ----------------------------- head packing ---------------------------------
def pack_heads(heads):
    """Concatenate Linear heads along the class axis, pad to a lane multiple.

    Padded columns get zero weights and -inf bias so they never influence the
    per-head softmax and are sliced away by the caller.  Called ONCE (hoisted
    out of the per-step forward).
    Returns (w_packed [C, N_pad] f32, b_packed [1, N_pad] f32, head_sizes).
    """
    sizes = [int(h["w"].shape[1]) for h in heads]
    n_cat = sum(sizes)
    n_pad = _round_up(n_cat, LANE)
    w_cat = jnp.concatenate([h["w"] for h in heads], axis=1)        # [C, n_cat]
    b_cat = jnp.concatenate([h["b"] for h in heads], axis=0)        # [n_cat]
    w_packed = jnp.pad(w_cat, ((0, 0), (0, n_pad - n_cat))).astype(jnp.float32)
    b_packed = jnp.pad(b_cat, (0, n_pad - n_cat),
                       constant_values=-jnp.inf).reshape(1, n_pad)
    return w_packed, b_packed.astype(jnp.float32), sizes


def pack_gtc_decoder(params, *, infer_gtc=True):
    packed = {"ctc": pack_heads([params["ctc_decoder"]])}
    if infer_gtc:
        packed["both"] = pack_heads(
            [params["gtc_decoder"], params["ctc_decoder"]])
    return packed


# ----------------------------- decoder wrapper ------------------------------
def gtc_decoder_forward(packed, x, *, training=False, infer_gtc=True,
                        detach=True):
    """GTCDecoder.forward (forward pass only) on pre-packed head weights.

    Both heads read the same activations (detach/stop_gradient is a forward
    no-op), so the gtc + ctc Linear(+softmax) heads run in ONE fused Pallas
    call; per-head predictions are sliced straight from the padded output.
    """
    del detach  # TODO(synk): no custom_vjp — fused-head gradients (and the ctc-head detach) not implemented.
    B, C, H, W = x.shape
    HW = H * W
    if training or infer_gtc:
        w_p, b_p, sizes = packed["both"]
        out = fused_heads_pallas(x, w_p, b_p, sizes,
                                 apply_softmax=not training)
        n_gtc, n_ctc = sizes
        return {"gtc_pred": out[:, :HW, :n_gtc],
                "ctc_pred": out[:, :HW, n_gtc:n_gtc + n_ctc]}
    w_p, b_p, sizes = packed["ctc"]
    out = fused_heads_pallas(x, w_p, b_p, sizes, apply_softmax=True)
    return out[:, :HW, :sizes[0]]


# ------------------------------- param init ---------------------------------
def init_linear(key, in_channels, out_channels):
    # PyTorch nn.Linear default init: U(-k, k), k = 1/sqrt(fan_in).
    k = 1.0 / math.sqrt(in_channels)
    kw, kb = jax.random.split(key)
    w = jax.random.uniform(kw, (in_channels, out_channels), jnp.float32, -k, k)
    b = jax.random.uniform(kb, (out_channels,), jnp.float32, -k, k)
    return {"w": w, "b": b}


def init_gtc_decoder(key, in_channels, out_channels):
    # infer_gtc=True: gtc head -> out_channels[0], ctc head -> out_channels[1]
    k_gtc, k_ctc = jax.random.split(key)
    return {
        "gtc_decoder": init_linear(k_gtc, in_channels, out_channels[0]),
        "ctc_decoder": init_linear(k_ctc, in_channels, out_channels[1]),
    }


# ---------------------------------- main -------------------------------------
if __name__ == "__main__":
    key = jax.random.PRNGKey(0)
    k_x, k_p = jax.random.split(key)

    B, C_in, H, W = 2, 32, 4, 32            # NCHW encoder feature map (HW=128)
    out_channels = (37, 26)                 # (gtc classes, ctc classes)

    x = jax.random.normal(k_x, (B, C_in, H, W), dtype=jnp.float32)
    params = init_gtc_decoder(k_p, C_in, out_channels)
    packed = pack_gtc_decoder(params, infer_gtc=True)   # hoisted, once

    out = gtc_decoder_forward(packed, x, training=False, infer_gtc=True)
    out = jax.block_until_ready(out)

    # Pure-JAX f32 reference (kernel stores bf16 and uses approx reciprocal,
    # hence the relaxed tolerance).
    def ref_head(p, xs, softmax):
        y = xs @ p["w"] + p["b"]
        return jax.nn.softmax(y, axis=-1) if softmax else y

    x_seq = jnp.transpose(x.reshape(B, C_in, H * W), (0, 2, 1))
    ref_gtc = ref_head(params["gtc_decoder"], x_seq, True)
    ref_ctc = ref_head(params["ctc_decoder"], x_seq, True)
    assert out["gtc_pred"].shape == (B, H * W, out_channels[0])
    assert out["ctc_pred"].shape == (B, H * W, out_channels[1])
    assert jnp.allclose(out["gtc_pred"].astype(jnp.float32), ref_gtc,
                        atol=1e-2, rtol=1e-2)
    assert jnp.allclose(out["ctc_pred"].astype(jnp.float32), ref_ctc,
                        atol=1e-2, rtol=1e-2)

    # Training path: raw logits from the same fused kernel (no softmax).
    out_tr = jax.block_until_ready(
        gtc_decoder_forward(packed, x, training=True, infer_gtc=True))
    assert jnp.allclose(out_tr["gtc_pred"].astype(jnp.float32),
                        ref_head(params["gtc_decoder"], x_seq, False),
                        atol=2e-2, rtol=2e-2)
    assert jnp.allclose(out_tr["ctc_pred"].astype(jnp.float32),
                        ref_head(params["ctc_decoder"], x_seq, False),
                        atol=2e-2, rtol=2e-2)

    # Eval path with infer_gtc=False: ctc head only (softmaxed).
    out_ctc = jax.block_until_ready(
        gtc_decoder_forward(packed, x, training=False, infer_gtc=False))
    assert out_ctc.shape == (B, H * W, out_channels[1])
    assert jnp.allclose(out_ctc.astype(jnp.float32), ref_ctc,
                        atol=1e-2, rtol=1e-2)

    print("KERNEL_OK")
</pallas_src>

<mosaic_0001>
module attributes {stable_mosaic.version = 11 : i64} {
  func.func @_fused_heads_kernel(%arg0: i32, %arg1: i32, %arg2: memref<1x32x128xf32, #tpu.memory_space<vmem>>, %arg3: memref<32x128xf32, #tpu.memory_space<vmem>>, %arg4: memref<1x128xf32, #tpu.memory_space<vmem>>, %arg5: memref<1x128x128xbf16, #tpu.memory_space<vmem>>) attributes {dimension_semantics = [#tpu.dimension_semantics<parallel>, #tpu.dimension_semantics<parallel>], iteration_bounds = array<i64: 2, 1>, scalar_prefetch = 0 : i64, scratch_operands = 0 : i64, tpu.core_type = #tpu.core_type<tc>, window_params = [{transform_indices = @transform_0, window_bounds = array<i64: 1, 32, 128>}, {pipeline_mode = #tpu.pipeline_mode<synchronous>, transform_indices = @transform_1, window_bounds = array<i64: 32, 128>}, {pipeline_mode = #tpu.pipeline_mode<synchronous>, transform_indices = @transform_2, window_bounds = array<i64: 1, 128>}, {transform_indices = @transform_3, window_bounds = array<i64: 1, 128, 128>}]} {
    %c0 = arith.constant 0 : index
    %c0_0 = arith.constant 0 : index
    %c0_1 = arith.constant 0 : index
    %0 = vector.load %arg2[%c0, %c0_0, %c0_1] : memref<1x32x128xf32, #tpu.memory_space<vmem>>, vector<1x32x128xf32>
    %1 = vector.shape_cast %0 : vector<1x32x128xf32> to vector<32x128xf32>
    %c0_2 = arith.constant 0 : index
    %c0_3 = arith.constant 0 : index
    %2 = vector.load %arg3[%c0_2, %c0_3] : memref<32x128xf32, #tpu.memory_space<vmem>>, vector<32x128xf32>
    %cst = arith.constant dense<0.000000e+00> : vector<128x128xf32>
    %3 = tpu.matmul %1, %2, %cst {dimension_numbers = #tpu.dot_dimension_numbers<[0], [0], [1], [1], [0, 1, 1, 1], [], []>} : vector<32x128xf32>, vector<32x128xf32>, vector<128x128xf32> -> vector<128x128xf32>
    %c0_4 = arith.constant 0 : index
    %c0_5 = arith.constant 0 : index
    %4 = vector.load %arg4[%c0_4, %c0_5] : memref<1x128xf32, #tpu.memory_space<vmem>>, vector<1x128xf32>
    %5 = vector.broadcast %4 : vector<1x128xf32> to vector<128x128xf32>
    %6 = arith.addf %3, %5 : vector<128x128xf32>
    %7 = tpu.iota {dimensions = array<i32: 1>} : vector<128x128xi32>
    %c0_i32 = arith.constant 0 : i32
    %8 = vector.broadcast %c0_i32 : i32 to vector<128x128xi32>
    %9 = arith.cmpi sge, %7, %8 : vector<128x128xi32>
    %c37_i32 = arith.constant 37 : i32
    %10 = vector.broadcast %c37_i32 : i32 to vector<128x128xi32>
    %11 = arith.cmpi slt, %7, %10 : vector<128x128xi32>
    %12 = arith.andi %9, %11 : vector<128x128xi1>
    %cst_6 = arith.constant 0xFF800000 : f32
    %13 = vector.broadcast %cst_6 : f32 to vector<128x128xf32>
    %14 = arith.select %12, %6, %13 : vector<128x128xi1>, vector<128x128xf32>
    %cst_7 = arith.constant dense<0xFF800000> : vector<128xf32>
    %15 = vector.multi_reduction <maximumf>, %14, %cst_7 [1] : vector<128x128xf32> to vector<128xf32>
    %16 = vector.shape_cast %15 : vector<128xf32> to vector<128x1xf32>
    %c37_i32_8 = arith.constant 37 : i32
    %17 = vector.broadcast %c37_i32_8 : i32 to vector<128x128xi32>
    %18 = arith.cmpi sge, %7, %17 : vector<128x128xi32>
    %c63_i32 = arith.constant 63 : i32
    %19 = vector.broadcast %c63_i32 : i32 to vector<128x128xi32>
    %20 = arith.cmpi slt, %7, %19 : vector<128x128xi32>
    %21 = arith.andi %18, %20 : vector<128x128xi1>
    %cst_9 = arith.constant 0xFF800000 : f32
    %22 = vector.broadcast %cst_9 : f32 to vector<128x128xf32>
    %23 = arith.select %21, %6, %22 : vector<128x128xi1>, vector<128x128xf32>
    %cst_10 = arith.constant dense<0xFF800000> : vector<128xf32>
    %24 = vector.multi_reduction <maximumf>, %23, %cst_10 [1] : vector<128x128xf32> to vector<128xf32>
    %25 = vector.shape_cast %24 : vector<128xf32> to vector<128x1xf32>
    %26 = vector.shape_cast %25 : vector<128x1xf32> to vector<128x1xf32>
    %27 = vector.broadcast %26 : vector<128x1xf32> to vector<128x128xf32>
    %28 = vector.shape_cast %16 : vector<128x1xf32> to vector<128x1xf32>
    %29 = vector.broadcast %28 : vector<128x1xf32> to vector<128x128xf32>
    %30 = arith.select %21, %27, %29 : vector<128x128xi1>, vector<128x128xf32>
    %31 = arith.subf %6, %30 : vector<128x128xf32>
    %32 = math.exp %31 : vector<128x128xf32>
    %cst_11 = arith.constant 0.000000e+00 : f32
    %33 = vector.broadcast %cst_11 : f32 to vector<128x128xf32>
    %34 = arith.select %12, %32, %33 : vector<128x128xi1>, vector<128x128xf32>
    %cst_12 = arith.constant dense<0.000000e+00> : vector<128xf32>
    %35 = vector.multi_reduction <add>, %34, %cst_12 [1] : vector<128x128xf32> to vector<128xf32>
    %36 = vector.shape_cast %35 : vector<128xf32> to vector<128x1xf32>
    %37 = tpu.reciprocal %36 {approx = true} : vector<128x1xf32> -> vector<128x1xf32>
    %cst_13 = arith.constant 0.000000e+00 : f32
    %38 = vector.broadcast %cst_13 : f32 to vector<128x128xf32>
    %39 = arith.select %21, %32, %38 : vector<128x128xi1>, vector<128x128xf32>
    %cst_14 = arith.constant dense<0.000000e+00> : vector<128xf32>
    %40 = vector.multi_reduction <add>, %39, %cst_14 [1] : vector<128x128xf32> to vector<128xf32>
    %41 = vector.shape_cast %40 : vector<128xf32> to vector<128x1xf32>
    %42 = tpu.reciprocal %41 {approx = true} : vector<128x1xf32> -> vector<128x1xf32>
    %43 = vector.shape_cast %42 : vector<128x1xf32> to vector<128x1xf32>
    %44 = vector.broadcast %43 : vector<128x1xf32> to vector<128x128xf32>
    %45 = vector.shape_cast %37 : vector<128x1xf32> to vector<128x1xf32>
    %46 = vector.broadcast %45 : vector<128x1xf32> to vector<128x128xf32>
    %47 = arith.select %21, %44, %46 : vector<128x128xi1>, vector<128x128xf32>
    %48 = arith.mulf %32, %47 : vector<128x128xf32>
    %49 = arith.truncf %48 : vector<128x128xf32> to vector<128x128xbf16>
    %c0_15 = arith.constant 0 : index
    %c0_16 = arith.constant 0 : index
    %c0_17 = arith.constant 0 : index
    %50 = vector.load %arg5[%c0_15, %c0_16, %c0_17] : memref<1x128x128xbf16, #tpu.memory_space<vmem>>, vector<1x128x128xbf16>
    %51 = vector.shape_cast %50 : vector<1x128x128xbf16> to vector<128x128xbf16>
    %52 = vector.shape_cast %49 : vector<128x128xbf16> to vector<1x128x128xbf16>
    tpu.vector_store %arg5[%c0_15, %c0_16, %c0_17], %52 {strides = array<i32>} : memref<1x128x128xbf16, #tpu.memory_space<vmem>>, vector<1x128x128xbf16>,
    return
  }
  func.func @transform_0(%arg0: i32, %arg1: i32) -> (i32, i32, i32) {
    %c0_i32 = arith.constant 0 : i32
    %c0_i32_0 = arith.constant 0 : i32
    return %arg0, %c0_i32, %arg1 : i32, i32, i32
  }
  func.func @transform_1(%arg0: i32, %arg1: i32) -> (i32, i32) {
    %c0_i32 = arith.constant 0 : i32
    %c0_i32_0 = arith.constant 0 : i32
    %c0_i32_1 = arith.constant 0 : i32
    return %c0_i32, %c0_i32_0 : i32, i32
  }
  func.func @transform_2(%arg0: i32, %arg1: i32) -> (i32, i32) {
    %c0_i32 = arith.constant 0 : i32
    %c0_i32_0 = arith.constant 0 : i32
    %c0_i32_1 = arith.constant 0 : i32
    return %c0_i32, %c0_i32_0 : i32, i32
  }
  func.func @transform_3(%arg0: i32, %arg1: i32) -> (i32, i32, i32) {
    %c0_i32 = arith.constant 0 : i32
    %c0_i32_0 = arith.constant 0 : i32
    return %arg0, %arg1, %c0_i32 : i32, i32, i32
  }
}

</mosaic_0001>

<llo_original>
// kernel: tpu_custom_call.1
$region0: #{tpu_custom_call.1}
  #allocation0 [shape = 'u32[]', space=smem, size = 0x4, offset = 0x4, fixed_abs, tag = 'smem constant byte address 0x4 - core index']
  #allocation1 [shape = 'u32[144,128]{1,0:T(1,128)}', space=vmem, size = 0x12000, scoped, tag = 'internal scratch']
  %s0 = inlined_call_operand.hbm [shape: f32[2,32,128], index: 0, kind: input, shape index: {}]
  %s1 = inlined_call_operand.hbm [shape: f32[32,128], index: 1, kind: input, shape index: {}]
  %s2 = inlined_call_operand.vmem [shape: f32[1,128], index: 2, kind: input, shape index: {}]
  %s3 = inlined_call_operand.hbm [shape: bf16[2,128,128], index: 3, kind: output, shape index: {}]
  %s4 = sld [smem:[#allocation0]]
  $region53: #{tpu_custom_call.1} parent=0
    _
  %s6 = ssub.s32 1, %s4
  %s7 = scalar_select 0, %s6, %s4
  $region1: #{tpu_custom_call.1} parent=0
    #allocation2 [shape = 'u8[32768]{0}', space=vmem, size = 0x8000, scoped, tag = 'input window, operand 0']
    #allocation3 [shape = 's32[2]{0}', space=sflag, size = 0x8, scoped, tag = 'scoped memory for tpu_custom_call.1']
    #allocation4 [shape = 's32[2]{0}', space=sflag, size = 0x8, scoped, tag = 'scoped memory for tpu_custom_call.1']
    #allocation5 [shape = 'u8[16384]{0}', space=vmem, size = 0x4000, scoped, tag = 'input window, operand 1, single buffered']
    #allocation6 [shape = 's32[1]{0}', space=sflag, size = 0x4, scoped, tag = 'scoped memory for tpu_custom_call.1']
    #allocation7 [shape = 'u8[65536]{0}', space=vmem, size = 0x10000, scoped, tag = 'output window, operand 0']
    %8 = vsyncpa [#allocation3], 0
    %s9 = scalar_lea.sflag [#allocation3], 1
    %10 = vsyncpa %s9, 0
    %11 = vsyncpa [#allocation6], 0
    %12 = vsyncpa [#allocation4], 0
    %s13 = scalar_lea.sflag [#allocation4], 1
    %14 = vsyncpa %s13, 0
    loop: start=0, step=1, limit=4
    $region2: #{tpu_custom_call.1} parent=1 // loop_pre_header
      _
    $region3: #{tpu_custom_call.1} parent=1 // loop_header
      %s16 = sphi 0, %s20
      %p17 = scmp.ge.s32.totalorder %s16, 4
      %s23 = sphi 0, %s35
      %s24 = sphi 0, %s31
      %s25 = sphi 0, %s23
      %s26 = sphi 0, %s24
      %s27 = sphi 0, %s25
      %s28 = sphi 0, %s26
      %s40 = sphi 0, %s42
      %s43 = sphi 0, %s40
      %s44 = sphi 0, %s43
      %s60 = sphi 0, %s44
      %s64 = sphi 0, %s64
      %s66 = sphi 0, %s64
      %s67 = sphi 0, %s66
      %s81 = sphi 0, %s67
      %s85 = sphi 0, %s85
      %s87 = sphi 0, %s85
      %s88 = sphi 0, %s87
      %s102 = sphi 0, %s88
      %s110 = sphi 0, %s112
      %s113 = sphi 0, %s110
      %s114 = sphi 0, %s113
      %s130 = sphi 0, %s114
    $region4: #{tpu_custom_call.1} parent=1 // loop_header_branch
      %19 = sbr.rel (%p17) target = $region8
    $region5: #{tpu_custom_call.1} parent=1 // loop_body
      %s21 = ssub.s32 %s16, 1
      %s22 = ssub.s32 %s16, 2
      %s29 = sadd.s32 1, %s24
      %p30 = scmp.ge.s32.totalorder %s29, 1
      %s31 = scalar_select %p30, 0, %s29
      %s32 = sadd.s32 1, %s23
      %s33 = scalar_select %p30, %s32, %s23
      %p34 = scmp.ge.s32.totalorder %s33, 2
      %s35 = scalar_select %p34, 0, %s33
      %s36 = ssub.s32 %s23, %s35
      %s37 = ssub.s32 %s24, %s31
      %s38 = sor.u32 %s36, %s37
      %p39 = scmp.eq.s32.totalorder %s38, 0
      %s41 = sadd.s32 %s40, 1
      %s42 = scalar_select %p39, %s40, %s41
      %p45 = pneg %p39
      %p46 = scmp.eq.s32.totalorder %s16, 1
      %p47 = por %p45, %p46
      %p48 = scmp.ne.s32.totalorder %s40, %s43
      %p49 = scmp.eq.s32.totalorder %s16, 0
      %p50 = por %p48, %p49
      %p51 = scmp.ne.s32.totalorder %s40, %s43
      %p52 = scmp.eq.s32.totalorder %s21, 1
      %p53 = por %p51, %p52
      %p54 = scmp.ne.s32.totalorder %s43, %s44
      %p55 = scmp.eq.s32.totalorder %s21, 0
      %p56 = por %p54, %p55
      %p57 = scmp.ne.s32.totalorder %s43, %s44
      %p58 = scmp.eq.s32.totalorder %s22, 1
      %p59 = por %p57, %p58
      %p61 = scmp.ne.s32.totalorder %s44, %s60
      %p62 = scmp.eq.s32.totalorder %s22, 0
      %p63 = por %p61, %p62
      %s65 = sadd.s32 %s64, 1
      %p68 = scmp.eq.s32.totalorder %s16, 1
      %p69 = scmp.ne.s32.totalorder %s64, %s66
      %p70 = scmp.eq.s32.totalorder %s16, 0
      %p71 = por %p69, %p70
      %p72 = scmp.ne.s32.totalorder %s64, %s66
      %p73 = scmp.eq.s32.totalorder %s21, 1
      %p74 = por %p72, %p73
      %p75 = scmp.ne.s32.totalorder %s66, %s67
      %p76 = scmp.eq.s32.totalorder %s21, 0
      %p77 = por %p75, %p76
      %p78 = scmp.ne.s32.totalorder %s66, %s67
      %p79 = scmp.eq.s32.totalorder %s22, 1
      %p80 = por %p78, %p79
      %p82 = scmp.ne.s32.totalorder %s67, %s81
      %p83 = scmp.eq.s32.totalorder %s22, 0
      %p84 = por %p82, %p83
      %s86 = sadd.s32 %s85, 1
      %p89 = scmp.eq.s32.totalorder %s16, 1
      %p90 = scmp.ne.s32.totalorder %s85, %s87
      %p91 = scmp.eq.s32.totalorder %s16, 0
      %p92 = por %p90, %p91
      %p93 = scmp.ne.s32.totalorder %s85, %s87
      %p94 = scmp.eq.s32.totalorder %s21, 1
      %p95 = por %p93, %p94
      %p96 = scmp.ne.s32.totalorder %s87, %s88
      %p97 = scmp.eq.s32.totalorder %s21, 0
      %p98 = por %p96, %p97
      %p99 = scmp.ne.s32.totalorder %s87, %s88
      %p100 = scmp.eq.s32.totalorder %s22, 1
      %p101 = por %p99, %p100
      %p103 = scmp.ne.s32.totalorder %s88, %s102
      %p104 = scmp.eq.s32.totalorder %s22, 0
      %p105 = por %p103, %p104
      %s106 = ssub.s32 %s23, %s35
      %s107 = ssub.s32 %s24, %s31
      %s108 = sor.u32 %s106, %s107
      %p109 = scmp.eq.s32.totalorder %s108, 0
      %s111 = sadd.s32 %s110, 1
      %s112 = scalar_select %p109, %s110, %s111
      %p115 = pneg %p109
      %p116 = scmp.eq.s32.totalorder %s16, 1
      %p117 = por %p115, %p116
      %p118 = scmp.ne.s32.totalorder %s110, %s113
      %p119 = scmp.eq.s32.totalorder %s16, 0
      %p120 = por %p118, %p119
      %p121 = scmp.ne.s32.totalorder %s110, %s113
      %p122 = scmp.eq.s32.totalorder %s21, 1
      %p123 = por %p121, %p122
      %p124 = scmp.ne.s32.totalorder %s113, %s114
      %p125 = scmp.eq.s32.totalorder %s21, 0
      %p126 = por %p124, %p125
      %p127 = scmp.ne.s32.totalorder %s113, %s114
      %p128 = scmp.eq.s32.totalorder %s22, 1
      %p129 = por %p127, %p128
      %p131 = scmp.ne.s32.totalorder %s114, %s130
      %p132 = scmp.eq.s32.totalorder %s22, 0
      %p133 = por %p131, %p132
      %p134 = scmp.le.s32.totalorder 1, %s16
      %p135 = scmp.lt.s32.totalorder %s16, 3
      %p136 = pnand %p134, %p135
      %p137 = pneg %p136
      // Predicated region
      $region9: #{tpu_custom_call.1} parent=5 // pred_check
        _
      $region10: #{tpu_custom_call.1} parent=5 // pred_check_branch
        %139 = sbr.rel (%p136) target = $region12
      $region11: #{tpu_custom_call.1} parent=5 // pred_region
        %s140 = ssub.s32 %s16, 1
        // Predicated region
        $region13: #{tpu_custom_call.1} parent=11 // pred_check
          %p141 = pneg %p77
        $region14: #{tpu_custom_call.1} parent=11 // pred_check_branch
          %143 = sbr.rel (%p141) target = $region16
        $region15: #{tpu_custom_call.1} parent=11 // pred_region
          %s145 = ssub.s32 512, 512
          %146 = vsyncadd [#allocation6], %s145
          %s147 = sshll.u32 [#allocation5], 4
          %s148 = int_to_ptr.vmem [resolvable:$true] %s147
          %153 = dma.hbm_to_vmem [thread:$0]  %s1, 512, %s148, [#allocation6], 128, 128, 8
        $region16: #{tpu_custom_call.1} parent=11 // pred_fallthru
          _
        // Predicated region
        $region17: #{tpu_custom_call.1} parent=11 // pred_check
          %p154 = pneg %p98
        $region18: #{tpu_custom_call.1} parent=11 // pred_check_branch
          %156 = sbr.rel (%p154) target = $region20
        $region19: #{tpu_custom_call.1} parent=11 // pred_region
          _
        $region20: #{tpu_custom_call.1} parent=11 // pred_fallthru
          _
      $region12: #{tpu_custom_call.1} parent=5 // pred_fallthru
        _
      %p157 = scmp.lt.s32.totalorder %s16, 2
      // Predicated region
      $region21: #{tpu_custom_call.1} parent=5 // pred_check
        %p158 = pneg %p157
      $region22: #{tpu_custom_call.1} parent=5 // pred_check_branch
        %160 = sbr.rel (%p158) target = $region24
      $region23: #{tpu_custom_call.1} parent=5 // pred_region
        // Predicated region
        $region25: #{tpu_custom_call.1} parent=23 // pred_check
          %p161 = pneg %p50
        $region26: #{tpu_custom_call.1} parent=23 // pred_check_branch
          %163 = sbr.rel (%p161) target = $region28
        $region27: #{tpu_custom_call.1} parent=23 // pred_region
          %s164 = sand.u32 %s40, 1
          %s165 = scalar_lea.sflag [#allocation3], %s164
          %s166 = sand.u32 %s40, 1
          %s167 = smul.addr %s166, 32
          %s168 = scalar_lea.vmem [#allocation2], %s167
          %s170 = ssub.s32 512, 512
          %171 = vsyncadd %s165, %s170
          %s172 = smul.addr %s23, 4
          %s173 = sadd.s32 %s24, %s172
          %s174 = smul.addr %s173, 128
          %s175 = scalar_lea.hbm %s0, %s174
          %s176 = sshll.u32 %s168, 4
          %s177 = int_to_ptr.vmem [resolvable:$true] %s176
          %182 = dma.hbm_to_vmem [thread:$0]  %s175, 512, %s177, %s165, 128, 128, 8
        $region28: #{tpu_custom_call.1} parent=23 // pred_fallthru
          _
      $region24: #{tpu_custom_call.1} parent=5 // pred_fallthru
        _
      %p183 = scmp.le.s32.totalorder 1, %s16
      %p184 = scmp.lt.s32.totalorder %s16, 3
      %p185 = pnand %p183, %p184
      %p186 = pneg %p185
      // Predicated region
      $region29: #{tpu_custom_call.1} parent=5 // pred_check
        _
      $region30: #{tpu_custom_call.1} parent=5 // pred_check_branch
        %188 = sbr.rel (%p185) target = $region32
      $region31: #{tpu_custom_call.1} parent=5 // pred_region
        %s189 = ssub.s32 %s16, 1
        %s190 = sand.u32 %s43, 1
        %s191 = scalar_lea.sflag [#allocation3], %s190
        %s192 = sand.u32 %s43, 1
        %s193 = smul.addr %s192, 32
        %s194 = scalar_lea.vmem [#allocation2], %s193
        // Predicated region
        $region33: #{tpu_custom_call.1} parent=31 // pred_check
          %p195 = pneg %p56
        $region34: #{tpu_custom_call.1} parent=31 // pred_check_branch
          %197 = sbr.rel (%p195) target = $region36
        $region35: #{tpu_custom_call.1} parent=31 // pred_region
          %198 = dma.done %s191, 512
        $region36: #{tpu_custom_call.1} parent=31 // pred_fallthru
          _
        // Predicated region
        $region37: #{tpu_custom_call.1} parent=31 // pred_check
          %p199 = pneg %p77
        $region38: #{tpu_custom_call.1} parent=31 // pred_check_branch
          %201 = sbr.rel (%p199) target = $region40
        $region39: #{tpu_custom_call.1} parent=31 // pred_region
          %202 = dma.done [#allocation6], 512
        $region40: #{tpu_custom_call.1} parent=31 // pred_fallthru
          _
        %s203 = sand.u32 %s43, 1
        %s204 = scalar_lea.sflag [#allocation3], %s203
        %s205 = sand.u32 %s43, 1
        %s206 = smul.addr %s205, 32
        %s207 = scalar_lea.vmem [#allocation2], %s206
        %p208 = pneg %p56
        %p209 = pneg %p53
        %p210 = pneg %p77
        %p211 = pneg %p74
        %p212 = pneg %p98
        %p213 = pneg %p95
        %p214 = pneg %p126
        %p215 = pneg %p123
        %s216 = sand.u32 %s113, 1
        %s217 = scalar_lea.sflag [#allocation4], %s216
        %s218 = sand.u32 %s113, 1
        %s219 = smul.addr %s218, 64
        %s220 = scalar_lea.vmem [#allocation7], %s219
        %s221 = smul.u32 16, %s26
        %v222 = vld [vmem:[%s194] sm:$0xff]
        %v223 = vld [vmem:[%s194 + $0x8] sm:$0xff]
        %v224 = vld [vmem:[%s194 + $0x10] sm:$0xff]
        %v225 = vld [vmem:[%s194 + $0x18] sm:$0xff]
        %v226 = vld [vmem:[#allocation5] sm:$0xff]
        %v227 = vld [vmem:[#allocation5 + $0x8] sm:$0xff]
        %v228 = vld [vmem:[#allocation5 + $0x10] sm:$0xff]
        %v229 = vld [vmem:[#allocation5 + $0x18] sm:$0xff]
        %v230 = vld [vmem:[%s2] sm:$0x1]
        %v232 = vlaneseq
        %v233 = vshrl.u32 %v232, 7
        %v234 = vsub.s32 0, %v233
        %v235 = vrot.slane %v230, %v234
        %237 = vxpose.xlu0.b32.start [1/16] %v222, 128
        %238 = vxpose.xlu0.b32.cont [2/16] %v223, 128
        %239 = vxpose.xlu0.b32.cont [3/16] %v224, 128
        %240 = vxpose.xlu0.b32.cont [4/16] %v225, 128
        %241 = vxpose.xlu0.b32.cont [5/16] 0.0, 128
        %242 = vxpose.xlu0.b32.cont [6/16] 0.0, 128
        %243 = vxpose.xlu0.b32.cont [7/16] 0.0, 128
        %244 = vxpose.xlu0.b32.cont [8/16] 0.0, 128
        %245 = vxpose.xlu0.b32.cont [9/16] 0.0, 128
        %246 = vxpose.xlu0.b32.cont [10/16] 0.0, 128
        %247 = vxpose.xlu0.b32.cont [11/16] 0.0, 128
        %248 = vxpose.xlu0.b32.cont [12/16] 0.0, 128
        %249 = vxpose.xlu0.b32.cont [13/16] 0.0, 128
        %250 = vxpose.xlu0.b32.cont [14/16] 0.0, 128
        %251 = vxpose.xlu0.b32.cont [15/16] 0.0, 128
        %252 = vxpose.xlu0.b32.end [16/16] 0.0, 128
        %v253 = vpop.trf.xlu0
        %v254 = vpop.trf.xlu0
        %v255 = vpop.trf.xlu0
        %v256 = vpop.trf.xlu0
        %v257 = vpop.trf.xlu0
        %v258 = vpop.trf.xlu0
        %v259 = vpop.trf.xlu0
        %v260 = vpop.trf.xlu0
        %v261 = vpop.trf.xlu0
        %v262 = vpop.trf.xlu0
        %v263 = vpop.trf.xlu0
        %v264 = vpop.trf.xlu0
        %v265 = vpop.trf.xlu0
        %v266 = vpop.trf.xlu0
        %v267 = vpop.trf.xlu0
        %v268 = vpop.trf.xlu0
        %vm269 = vcmask 261120
        %v271 = vsel %vm269, %v253, 0
        %v274 = vsel %vm269, %v254, 0
        %v277 = vsel %vm269, %v255, 0
        %v280 = vsel %vm269, %v256, 0
        %v283 = vsel %vm269, %v257, 0
        %v286 = vsel %vm269, %v258, 0
        %v289 = vsel %vm269, %v259, 0
        %v292 = vsel %vm269, %v260, 0
        %v295 = vsel %vm269, %v261, 0
        %v298 = vsel %vm269, %v262, 0
        %v301 = vsel %vm269, %v263, 0
        %v304 = vsel %vm269, %v264, 0
        %v307 = vsel %vm269, %v265, 0
        %v310 = vsel %vm269, %v266, 0
        %v313 = vsel %vm269, %v267, 0
        %v316 = vsel %vm269, %v268, 0
        %318 = vmatprep.subr.mxu0 0.0
        %319 = vmatpush1.msra.mxu0 %v226
        %320 = vmatprep.subr.mxu0 0.0
        %321 = vmatpush1.msra.mxu0 %v227
        %322 = vmatprep.subr.mxu0 0.0
        %323 = vmatpush1.msra.mxu0 %v228
        %324 = vmatprep.subr.mxu0 0.0
        %325 = vmatpush1.msra.mxu0 %v229
        %326 = vmatprep.subr.mxu0 0.0
        %327 = vmatpush1.msra.mxu0 0.0
        %328 = vmatprep.subr.mxu0 0.0
        %329 = vmatpush1.msra.mxu0 0.0
        %330 = vmatprep.subr.mxu0 0.0
        %331 = vmatpush1.msra.mxu0 0.0
        %332 = vmatprep.subr.mxu0 0.0
        %333 = vmatpush1.msra.mxu0 0.0
        %334 = vmatprep.subr.mxu0 0.0
        %335 = vmatpush1.msra.mxu0 0.0
        %336 = vmatprep.subr.mxu0 0.0
        %337 = vmatpush1.msra.mxu0 0.0
        %338 = vmatprep.subr.mxu0 0.0
        %339 = vmatpush1.msra.mxu0 0.0
        %340 = vmatprep.subr.mxu0 0.0
        %341 = vmatpush1.msra.mxu0 0.0
        %342 = vmatprep.subr.mxu0 0.0
        %343 = vmatpush1.msra.mxu0 0.0
        %344 = vmatprep.subr.mxu0 0.0
        %345 = vmatpush1.msra.mxu0 0.0
        %346 = vmatprep.subr.mxu0 0.0
        %347 = vmatpush1.msra.mxu0 0.0
        %348 = vmatprep.subr.mxu0 0.0
        %349 = vmatpush1.msra.mxu0 0.0
        %350 = vmatprep.subr.mxu0 0.0
        %351 = vmatpush1.msra.mxu0 0.0
        %352 = vmatprep.subr.mxu0 0.0
        %353 = vmatpush1.msra.mxu0 0.0
        %354 = vmatprep.subr.mxu0 0.0
        %355 = vmatpush1.msra.mxu0 0.0
        %356 = vmatprep.subr.mxu0 0.0
        %357 = vmatpush1.msra.mxu0 0.0
        %358 = vmatprep.subr.mxu0 0.0
        %359 = vmatpush1.msra.mxu0 0.0
        %360 = vmatprep.subr.mxu0 0.0
        %361 = vmatpush1.msra.mxu0 0.0
        %362 = vmatprep.subr.mxu0 0.0
        %363 = vmatpush1.msra.mxu0 0.0
        %364 = vmatprep.subr.mxu0 0.0
        %365 = vmatpush1.msra.mxu0 0.0
        %366 = vmatprep.subr.mxu0 0.0
        %367 = vmatpush1.msra.mxu0 0.0
        %368 = vmatprep.subr.mxu0 0.0
        %369 = vmatpush1.msra.mxu0 0.0
        %370 = vmatprep.subr.mxu0 0.0
        %371 = vmatpush1.msra.mxu0 0.0
        %372 = vmatprep.subr.mxu0 0.0
        %373 = vmatpush1.msra.mxu0 0.0
        %374 = vmatprep.subr.mxu0 0.0
        %375 = vmatpush1.msra.mxu0 0.0
        %376 = vmatprep.subr.mxu0 0.0
        %377 = vmatpush1.msra.mxu0 0.0
        %378 = vmatprep.subr.mxu0 0.0
        %379 = vmatpush1.msra.mxu0 0.0
        %380 = vmatprep.subr.mxu0 0.0
        %381 = vmatpush1.msra.mxu0 0.0
        %382 = vmatprep.mubr.f32.mxu0 0.0
        %383 = vmatmul.mubr.f32.gmra.mrb[0].mxu0 %v271
        %v384 = vpop.f32.mrb[0].mxu0
        %v385 = vadd.f32 %v235, %v384
        %v386 = vpop.f32.mrb[0].mxu0
        %387 = vmatprep.mubr.f32.mxu0 0.0
        %388 = vmatmul.mubr.f32.gmra.mrb[0].mxu0 %v274
        %v389 = vpop.f32.mrb[0].mxu0
        %v390 = vadd.f32 %v235, %v389
        %v391 = vpop.f32.mrb[0].mxu0
        %392 = vmatprep.mubr.f32.mxu0 0.0
        %393 = vmatmul.mubr.f32.gmra.mrb[0].mxu0 %v277
        %v394 = vpop.f32.mrb[0].mxu0
        %v395 = vadd.f32 %v235, %v394
        %v396 = vpop.f32.mrb[0].mxu0
        %397 = vmatprep.mubr.f32.mxu0 0.0
        %398 = vmatmul.mubr.f32.gmra.mrb[0].mxu0 %v280
        %v399 = vpop.f32.mrb[0].mxu0
        %v400 = vadd.f32 %v235, %v399
        %v401 = vpop.f32.mrb[0].mxu0
        %402 = vmatprep.mubr.f32.mxu0 0.0
        %403 = vmatmul.mubr.f32.gmra.mrb[0].mxu0 %v283
        %v404 = vpop.f32.mrb[0].mxu0
        %v405 = vadd.f32 %v235, %v404
        %v406 = vpop.f32.mrb[0].mxu0
        %407 = vmatprep.mubr.f32.mxu0 0.0
        %408 = vmatmul.mubr.f32.gmra.mrb[0].mxu0 %v286
        %v409 = vpop.f32.mrb[0].mxu0
        %v410 = vadd.f32 %v235, %v409
        %v411 = vpop.f32.mrb[0].mxu0
        %412 = vmatprep.mubr.f32.mxu0 0.0
        %413 = vmatmul.mubr.f32.gmra.mrb[0].mxu0 %v289
        %v414 = vpop.f32.mrb[0].mxu0
        %v415 = vadd.f32 %v235, %v414
        %v416 = vpop.f32.mrb[0].mxu0
        %417 = vmatprep.mubr.f32.mxu0 0.0
        %418 = vmatmul.mubr.f32.gmra.mrb[0].mxu0 %v292
        %v419 = vpop.f32.mrb[0].mxu0
        %v420 = vadd.f32 %v235, %v419
        %v421 = vpop.f32.mrb[0].mxu0
        %422 = vmatprep.mubr.f32.mxu0 0.0
        %423 = vmatmul.mubr.f32.gmra.mrb[0].mxu0 %v295
        %v424 = vpop.f32.mrb[0].mxu0
        %v425 = vadd.f32 %v235, %v424
        %v426 = vpop.f32.mrb[0].mxu0
        %427 = vmatprep.mubr.f32.mxu0 0.0
        %428 = vmatmul.mubr.f32.gmra.mrb[0].mxu0 %v298
        %v429 = vpop.f32.mrb[0].mxu0
        %v430 = vadd.f32 %v235, %v429
        %v431 = vpop.f32.mrb[0].mxu0
        %432 = vmatprep.mubr.f32.mxu0 0.0
        %433 = vmatmul.mubr.f32.gmra.mrb[0].mxu0 %v301
        %v434 = vpop.f32.mrb[0].mxu0
        %v435 = vadd.f32 %v235, %v434
        %v436 = vpop.f32.mrb[0].mxu0
        %437 = vmatprep.mubr.f32.mxu0 0.0
        %438 = vmatmul.mubr.f32.gmra.mrb[0].mxu0 %v304
        %v439 = vpop.f32.mrb[0].mxu0
        %v440 = vadd.f32 %v235, %v439
        %v441 = vpop.f32.mrb[0].mxu0
        %442 = vmatprep.mubr.f32.mxu0 0.0
        %443 = vmatmul.mubr.f32.gmra.mrb[0].mxu0 %v307
        %v444 = vpop.f32.mrb[0].mxu0
        %v445 = vadd.f32 %v235, %v444
        %v446 = vpop.f32.mrb[0].mxu0
        %447 = vmatprep.mubr.f32.mxu0 0.0
        %448 = vmatmul.mubr.f32.gmra.mrb[0].mxu0 %v310
        %v449 = vpop.f32.mrb[0].mxu0
        %v450 = vadd.f32 %v235, %v449
        %v451 = vpop.f32.mrb[0].mxu0
        %452 = vmatprep.mubr.f32.mxu0 0.0
        %453 = vmatmul.mubr.f32.gmra.mrb[0].mxu0 %v313
        %v454 = vpop.f32.mrb[0].mxu0
        %v455 = vadd.f32 %v235, %v454
        %v456 = vpop.f32.mrb[0].mxu0
        %457 = vmatprep.mubr.f32.mxu0 0.0
        %458 = vmatmul.mubr.f32.gmra.mrb[0].mxu0 %v316
        %v459 = vpop.f32.mrb[0].mxu0
        %v460 = vadd.f32 %v235, %v459
        %v461 = vpop.f32.mrb[0].mxu0
        %462 = vdwg.mxu0
        %v463 = vlaneseq
        %v464 = vand.u32 %v463, 127
        %vm465 = vcmp.ge.s32.totalorder %v464, 0
        %vm466 = vcmp.lt.s32.totalorder %v464, 37
        %vm467 = vmand %vm465, %vm466
        %v468 = vsel %vm467, %v385, -inf
        %v469 = vsel %vm467, %v390, -inf
        %v470 = vsel %vm467, %v395, -inf
        %v471 = vsel %vm467, %v400, -inf
        %v472 = vsel %vm467, %v405, -inf
        %v473 = vsel %vm467, %v410, -inf
        %v474 = vsel %vm467, %v415, -inf
        %v475 = vsel %vm467, %v420, -inf
        %v476 = vsel %vm467, %v425, -inf
        %v477 = vsel %vm467, %v430, -inf
        %v478 = vsel %vm467, %v435, -inf
        %v479 = vsel %vm467, %v440, -inf
        %v480 = vsel %vm467, %v445, -inf
        %v481 = vsel %vm467, %v450, -inf
        %v482 = vsel %vm467, %v455, -inf
        %v483 = vsel %vm467, %v460, -inf
        %484 = vmax.xlane.f32.xlu0 %v468
        %v485 = vpop.xlane.xlu0 %484
        %486 = vmax.xlane.f32.xlu0 %v469
        %v487 = vpop.xlane.xlu0 %486
        %488 = vmax.xlane.f32.xlu0 %v470
        %v489 = vpop.xlane.xlu0 %488
        %490 = vmax.xlane.f32.xlu0 %v471
        %v491 = vpop.xlane.xlu0 %490
        %492 = vmax.xlane.f32.xlu0 %v472
        %v493 = vpop.xlane.xlu0 %492
        %494 = vmax.xlane.f32.xlu0 %v473
        %v495 = vpop.xlane.xlu0 %494
        %496 = vmax.xlane.f32.xlu0 %v474
        %v497 = vpop.xlane.xlu0 %496
        %498 = vmax.xlane.f32.xlu0 %v475
        %v499 = vpop.xlane.xlu0 %498
        %500 = vmax.xlane.f32.xlu0 %v476
        %v501 = vpop.xlane.xlu0 %500
        %502 = vmax.xlane.f32.xlu0 %v477
        %v503 = vpop.xlane.xlu0 %502
        %504 = vmax.xlane.f32.xlu0 %v478
        %v505 = vpop.xlane.xlu0 %504
        %506 = vmax.xlane.f32.xlu0 %v479
        %v507 = vpop.xlane.xlu0 %506
        %508 = vmax.xlane.f32.xlu0 %v480
        %v509 = vpop.xlane.xlu0 %508
        %510 = vmax.xlane.f32.xlu0 %v481
        %v511 = vpop.xlane.xlu0 %510
        %512 = vmax.xlane.f32.xlu0 %v482
        %v513 = vpop.xlane.xlu0 %512
        %514 = vmax.xlane.f32.xlu0 %v483
        %v515 = vpop.xlane.xlu0 %514
        %vm516 = vcmp.ge.s32.totalorder %v464, 37
        %vm517 = vcmp.lt.s32.totalorder %v464, 63
        %vm518 = vmand %vm516, %vm517
        %v519 = vsel %vm518, %v385, -inf
        %v520 = vsel %vm518, %v390, -inf
        %v521 = vsel %vm518, %v395, -inf
        %v522 = vsel %vm518, %v400, -inf
        %v523 = vsel %vm518, %v405, -inf
        %v524 = vsel %vm518, %v410, -inf
        %v525 = vsel %vm518, %v415, -inf
        %v526 = vsel %vm518, %v420, -inf
        %v527 = vsel %vm518, %v425, -inf
        %v528 = vsel %vm518, %v430, -inf
        %v529 = vsel %vm518, %v435, -inf
        %v530 = vsel %vm518, %v440, -inf
        %v531 = vsel %vm518, %v445, -inf
        %v532 = vsel %vm518, %v450, -inf
        %v533 = vsel %vm518, %v455, -inf
        %v534 = vsel %vm518, %v460, -inf
        %535 = vmax.xlane.f32.xlu0 %v519
        %v536 = vpop.xlane.xlu0 %535
        %537 = vmax.xlane.f32.xlu0 %v520
        %v538 = vpop.xlane.xlu0 %537
        %539 = vmax.xlane.f32.xlu0 %v521
        %v540 = vpop.xlane.xlu0 %539
        %541 = vmax.xlane.f32.xlu0 %v522
        %v542 = vpop.xlane.xlu0 %541
        %543 = vmax.xlane.f32.xlu0 %v523
        %v544 = vpop.xlane.xlu0 %543
        %545 = vmax.xlane.f32.xlu0 %v524
        %v546 = vpop.xlane.xlu0 %545
        %547 = vmax.xlane.f32.xlu0 %v525
        %v548 = vpop.xlane.xlu0 %547
        %549 = vmax.xlane.f32.xlu0 %v526
        %v550 = vpop.xlane.xlu0 %549
        %551 = vmax.xlane.f32.xlu0 %v527
        %v552 = vpop.xlane.xlu0 %551
        %553 = vmax.xlane.f32.xlu0 %v528
        %v554 = vpop.xlane.xlu0 %553
        %555 = vmax.xlane.f32.xlu0 %v529
        %v556 = vpop.xlane.xlu0 %555
        %557 = vmax.xlane.f32.xlu0 %v530
        %v558 = vpop.xlane.xlu0 %557
        %559 = vmax.xlane.f32.xlu0 %v531
        %v560 = vpop.xlane.xlu0 %559
        %561 = vmax.xlane.f32.xlu0 %v532
        %v562 = vpop.xlane.xlu0 %561
        %563 = vmax.xlane.f32.xlu0 %v533
        %v564 = vpop.xlane.xlu0 %563
        %565 = vmax.xlane.f32.xlu0 %v534
        %v566 = vpop.xlane.xlu0 %565
        %v567 = vsel %vm518, %v536, %v485
        %v568 = vsel %vm518, %v538, %v487
        %v569 = vsel %vm518, %v540, %v489
        %v570 = vsel %vm518, %v542, %v491
        %v571 = vsel %vm518, %v544, %v493
        %v572 = vsel %vm518, %v546, %v495
        %v573 = vsel %vm518, %v548, %v497
        %v574 = vsel %vm518, %v550, %v499
        %v575 = vsel %vm518, %v552, %v501
        %v576 = vsel %vm518, %v554, %v503
        %v577 = vsel %vm518, %v556, %v505
        %v578 = vsel %vm518, %v558, %v507
        %v579 = vsel %vm518, %v560, %v509
        %v580 = vsel %vm518, %v562, %v511
        %v581 = vsel %vm518, %v564, %v513
        %v582 = vsel %vm518, %v566, %v515
        %v583 = vsub.f32 %v385, %v567
        %v584 = vsub.f32 %v390, %v568
        %v585 = vsub.f32 %v395, %v569
        %v586 = vsub.f32 %v400, %v570
        %v587 = vsub.f32 %v405, %v571
        %v588 = vsub.f32 %v410, %v572
        %v589 = vsub.f32 %v415, %v573
        %v590 = vsub.f32 %v420, %v574
        %v591 = vsub.f32 %v425, %v575
        %v592 = vsub.f32 %v430, %v576
        %v593 = vsub.f32 %v435, %v577
        %v594 = vsub.f32 %v440, %v578
        %v595 = vsub.f32 %v445, %v579
        %v596 = vsub.f32 %v450, %v580
        %v597 = vsub.f32 %v455, %v581
        %v598 = vsub.f32 %v460, %v582
        %v599 = vmul.f32 %v583, 1.442695
        %v600 = vpow.pop %v599
        %v601 = vmul.f32 %v584, 1.442695
        %v602 = vpow.pop %v601
        %v603 = vmul.f32 %v585, 1.442695
        %v604 = vpow.pop %v603
        %v605 = vmul.f32 %v586, 1.442695
        %v606 = vpow.pop %v605
        %v607 = vmul.f32 %v587, 1.442695
        %v608 = vpow.pop %v607
        %v609 = vmul.f32 %v588, 1.442695
        %v610 = vpow.pop %v609
        %v611 = vmul.f32 %v589, 1.442695
        %v612 = vpow.pop %v611
        %v613 = vmul.f32 %v590, 1.442695
        %v614 = vpow.pop %v613
        %v615 = vmul.f32 %v591, 1.442695
        %v616 = vpow.pop %v615
        %v617 = vmul.f32 %v592, 1.442695
        %v618 = vpow.pop %v617
        %v619 = vmul.f32 %v593, 1.442695
        %v620 = vpow.pop %v619
        %v621 = vmul.f32 %v594, 1.442695
        %v622 = vpow.pop %v621
        %v623 = vmul.f32 %v595, 1.442695
        %v624 = vpow.pop %v623
        %v625 = vmul.f32 %v596, 1.442695
        %v626 = vpow.pop %v625
        %v627 = vmul.f32 %v597, 1.442695
        %v628 = vpow.pop %v627
        %v629 = vmul.f32 %v598, 1.442695
        %v630 = vpow.pop %v629
        %v631 = vsel %vm467, %v600, 0.0
        %v632 = vsel %vm467, %v602, 0.0
        %v633 = vsel %vm467, %v604, 0.0
        %v634 = vsel %vm467, %v606, 0.0
        %v635 = vsel %vm467, %v608, 0.0
        %v636 = vsel %vm467, %v610, 0.0
        %v637 = vsel %vm467, %v612, 0.0
        %v638 = vsel %vm467, %v614, 0.0
        %v639 = vsel %vm467, %v616, 0.0
        %v640 = vsel %vm467, %v618, 0.0
        %v641 = vsel %vm467, %v620, 0.0
        %v642 = vsel %vm467, %v622, 0.0
        %v643 = vsel %vm467, %v624, 0.0
        %v644 = vsel %vm467, %v626, 0.0
        %v645 = vsel %vm467, %v628, 0.0
        %v646 = vsel %vm467, %v630, 0.0
        %647 = vadd.xlane.f32.xlu0 %v631
        %v648 = vpop.xlane.xlu0 %647
        %649 = vadd.xlane.f32.xlu0 %v632
        %v650 = vpop.xlane.xlu0 %649
        %651 = vadd.xlane.f32.xlu0 %v633
        %v652 = vpop.xlane.xlu0 %651
        %653 = vadd.xlane.f32.xlu0 %v634
        %v654 = vpop.xlane.xlu0 %653
        %655 = vadd.xlane.f32.xlu0 %v635
        %v656 = vpop.xlane.xlu0 %655
        %657 = vadd.xlane.f32.xlu0 %v636
        %v658 = vpop.xlane.xlu0 %657
        %659 = vadd.xlane.f32.xlu0 %v637
        %v660 = vpop.xlane.xlu0 %659
        %661 = vadd.xlane.f32.xlu0 %v638
        %v662 = vpop.xlane.xlu0 %661
        %663 = vadd.xlane.f32.xlu0 %v639
        %v664 = vpop.xlane.xlu0 %663
        %665 = vadd.xlane.f32.xlu0 %v640
        %v666 = vpop.xlane.xlu0 %665
        %667 = vadd.xlane.f32.xlu0 %v641
        %v668 = vpop.xlane.xlu0 %667
        %669 = vadd.xlane.f32.xlu0 %v642
        %v670 = vpop.xlane.xlu0 %669
        %671 = vadd.xlane.f32.xlu0 %v643
        %v672 = vpop.xlane.xlu0 %671
        %673 = vadd.xlane.f32.xlu0 %v644
        %v674 = vpop.xlane.xlu0 %673
        %675 = vadd.xlane.f32.xlu0 %v645
        %v676 = vpop.xlane.xlu0 %675
        %677 = vadd.xlane.f32.xlu0 %v646
        %v678 = vpop.xlane.xlu0 %677
        %v679 = vrcp.pop %v648
        %v680 = vrcp.pop %v650
        %v681 = vrcp.pop %v652
        %v682 = vrcp.pop %v654
        %v683 = vrcp.pop %v656
        %v684 = vrcp.pop %v658
        %v685 = vrcp.pop %v660
        %v686 = vrcp.pop %v662
        %v687 = vrcp.pop %v664
        %v688 = vrcp.pop %v666
        %v689 = vrcp.pop %v668
        %v690 = vrcp.pop %v670
        %v691 = vrcp.pop %v672
        %v692 = vrcp.pop %v674
        %v693 = vrcp.pop %v676
        %v694 = vrcp.pop %v678
        %v695 = vsel %vm518, %v600, 0.0
        %v696 = vsel %vm518, %v602, 0.0
        %v697 = vsel %vm518, %v604, 0.0
        %v698 = vsel %vm518, %v606, 0.0
        %v699 = vsel %vm518, %v608, 0.0
        %v700 = vsel %vm518, %v610, 0.0
        %v701 = vsel %vm518, %v612, 0.0
        %v702 = vsel %vm518, %v614, 0.0
        %v703 = vsel %vm518, %v616, 0.0
        %v704 = vsel %vm518, %v618, 0.0
        %v705 = vsel %vm518, %v620, 0.0
        %v706 = vsel %vm518, %v622, 0.0
        %v707 = vsel %vm518, %v624, 0.0
        %v708 = vsel %vm518, %v626, 0.0
        %v709 = vsel %vm518, %v628, 0.0
        %v710 = vsel %vm518, %v630, 0.0
        %711 = vadd.xlane.f32.xlu0 %v695
        %v712 = vpop.xlane.xlu0 %711
        %713 = vadd.xlane.f32.xlu0 %v696
        %v714 = vpop.xlane.xlu0 %713
        %715 = vadd.xlane.f32.xlu0 %v697
        %v716 = vpop.xlane.xlu0 %715
        %717 = vadd.xlane.f32.xlu0 %v698
        %v718 = vpop.xlane.xlu0 %717
        %719 = vadd.xlane.f32.xlu0 %v699
        %v720 = vpop.xlane.xlu0 %719
        %721 = vadd.xlane.f32.xlu0 %v700
        %v722 = vpop.xlane.xlu0 %721
        %723 = vadd.xlane.f32.xlu0 %v701
        %v724 = vpop.xlane.xlu0 %723
        %725 = vadd.xlane.f32.xlu0 %v702
        %v726 = vpop.xlane.xlu0 %725
        %727 = vadd.xlane.f32.xlu0 %v703
        %v728 = vpop.xlane.xlu0 %727
        %729 = vadd.xlane.f32.xlu0 %v704
        %v730 = vpop.xlane.xlu0 %729
        %731 = vadd.xlane.f32.xlu0 %v705
        %v732 = vpop.xlane.xlu0 %731
        %733 = vadd.xlane.f32.xlu0 %v706
        %v734 = vpop.xlane.xlu0 %733
        %735 = vadd.xlane.f32.xlu0 %v707
        %v736 = vpop.xlane.xlu0 %735
        %737 = vadd.xlane.f32.xlu0 %v708
        %v738 = vpop.xlane.xlu0 %737
        %739 = vadd.xlane.f32.xlu0 %v709
        %v740 = vpop.xlane.xlu0 %739
        %741 = vadd.xlane.f32.xlu0 %v710
        %v742 = vpop.xlane.xlu0 %741
        %v743 = vrcp.pop %v712
        %v744 = vrcp.pop %v714
        %v745 = vrcp.pop %v716
        %v746 = vrcp.pop %v718
        %v747 = vrcp.pop %v720
        %v748 = vrcp.pop %v722
        %v749 = vrcp.pop %v724
        %v750 = vrcp.pop %v726
        %v751 = vrcp.pop %v728
        %v752 = vrcp.pop %v730
        %v753 = vrcp.pop %v732
        %v754 = vrcp.pop %v734
        %v755 = vrcp.pop %v736
        %v756 = vrcp.pop %v738
        %v757 = vrcp.pop %v740
        %v758 = vrcp.pop %v742
        %v759 = vsel %vm518, %v743, %v679
        %v760 = vsel %vm518, %v744, %v680
        %v761 = vsel %vm518, %v745, %v681
        %v762 = vsel %vm518, %v746, %v682
        %v763 = vsel %vm518, %v747, %v683
        %v764 = vsel %vm518, %v748, %v684
        %v765 = vsel %vm518, %v749, %v685
        %v766 = vsel %vm518, %v750, %v686
        %v767 = vsel %vm518, %v751, %v687
        %v768 = vsel %vm518, %v752, %v688
        %v769 = vsel %vm518, %v753, %v689
        %v770 = vsel %vm518, %v754, %v690
        %v771 = vsel %vm518, %v755, %v691
        %v772 = vsel %vm518, %v756, %v692
        %v773 = vsel %vm518, %v757, %v693
        %v774 = vsel %vm518, %v758, %v694
        %v775 = vmul.f32 %v600, %v759
        %v776 = vmul.f32 %v602, %v760
        %v777 = vmul.f32 %v604, %v761
        %v778 = vmul.f32 %v606, %v762
        %v779 = vmul.f32 %v608, %v763
        %v780 = vmul.f32 %v610, %v764
        %v781 = vmul.f32 %v612, %v765
        %v782 = vmul.f32 %v614, %v766
        %v783 = vmul.f32 %v616, %v767
        %v784 = vmul.f32 %v618, %v768
        %v785 = vmul.f32 %v620, %v769
        %v786 = vmul.f32 %v622, %v770
        %v787 = vmul.f32 %v624, %v771
        %v788 = vmul.f32 %v626, %v772
        %v789 = vmul.f32 %v628, %v773
        %v790 = vmul.f32 %v630, %v774
        %v791 = vpack.c.bf16 %v776, %v775
        %v792 = vpack.c.bf16 %v778, %v777
        %v793 = vpack.c.bf16 %v780, %v779
        %v794 = vpack.c.bf16 %v782, %v781
        %v795 = vpack.c.bf16 %v784, %v783
        %v796 = vpack.c.bf16 %v786, %v785
        %v797 = vpack.c.bf16 %v788, %v787
        %v798 = vpack.c.bf16 %v790, %v789
        %v807 = vunpack.c.l.b16 %v791
        %v808 = vunpack.c.h.b16 %v791
        %v809 = vunpack.c.l.b16 %v792
        %v810 = vunpack.c.h.b16 %v792
        %v811 = vunpack.c.l.b16 %v793
        %v812 = vunpack.c.h.b16 %v793
        %v813 = vunpack.c.l.b16 %v794
        %v814 = vunpack.c.h.b16 %v794
        %v815 = vunpack.c.l.b16 %v795
        %v816 = vunpack.c.h.b16 %v795
        %v817 = vunpack.c.l.b16 %v796
        %v818 = vunpack.c.h.b16 %v796
        %v819 = vunpack.c.l.b16 %v797
        %v820 = vunpack.c.h.b16 %v797
        %v821 = vunpack.c.l.b16 %v798
        %v822 = vunpack.c.h.b16 %v798
        %v823 = vpack.c.b16 %v807, %v807
        %v824 = vpack.c.b16 %v808, %v808
        %v825 = vpack.c.b16 %v809, %v809
        %v826 = vpack.c.b16 %v810, %v810
        %v827 = vpack.c.b16 %v811, %v811
        %v828 = vpack.c.b16 %v812, %v812
        %v829 = vpack.c.b16 %v813, %v813
        %v830 = vpack.c.b16 %v814, %v814
        %v831 = vpack.c.b16 %v815, %v815
        %v832 = vpack.c.b16 %v816, %v816
        %v833 = vpack.c.b16 %v817, %v817
        %v834 = vpack.c.b16 %v818, %v818
        %v835 = vpack.c.b16 %v819, %v819
        %v836 = vpack.c.b16 %v820, %v820
        %v837 = vpack.c.b16 %v821, %v821
        %v838 = vpack.c.b16 %v822, %v822
        %855 = vst [vmem:[%s220] sm:$0xf] %v823
        %856 = vst [vmem:[%s220 + $0x4] sm:$0xf] %v824
        %857 = vst [vmem:[%s220 + $0x8] sm:$0xf] %v825
        %858 = vst [vmem:[%s220 + $0xc] sm:$0xf] %v826
        %859 = vst [vmem:[%s220 + $0x10] sm:$0xf] %v827
        %860 = vst [vmem:[%s220 + $0x14] sm:$0xf] %v828
        %861 = vst [vmem:[%s220 + $0x18] sm:$0xf] %v829
        %862 = vst [vmem:[%s220 + $0x1c] sm:$0xf] %v830
        %863 = vst [vmem:[%s220 + $0x20] sm:$0xf] %v831
        %864 = vst [vmem:[%s220 + $0x24] sm:$0xf] %v832
        %865 = vst [vmem:[%s220 + $0x28] sm:$0xf] %v833
        %866 = vst [vmem:[%s220 + $0x2c] sm:$0xf] %v834
        %867 = vst [vmem:[%s220 + $0x30] sm:$0xf] %v835
        %868 = vst [vmem:[%s220 + $0x34] sm:$0xf] %v836
        %869 = vst [vmem:[%s220 + $0x38] sm:$0xf] %v837
        %870 = vst [vmem:[%s220 + $0x3c] sm:$0xf] %v838
        %s871 = sand.u32 %s113, 1
        %s872 = scalar_lea.sflag [#allocation4], %s871
        %s873 = sand.u32 %s113, 1
        %s874 = smul.addr %s873, 64
        %s875 = scalar_lea.vmem [#allocation7], %s874
        // Predicated region
        $region41: #{tpu_custom_call.1} parent=31 // pred_check
          %p876 = pneg %p123
        $region42: #{tpu_custom_call.1} parent=31 // pred_check_branch
          %878 = sbr.rel (%p876) target = $region44
        $region43: #{tpu_custom_call.1} parent=31 // pred_region
          %s879 = smul.u32 16, %s26
          %s881 = ssub.s32 1024, 1024
          %882 = vsyncadd %s872, %s881
          %s883 = smul.addr %s25, 16
          %s884 = sadd.s32 %s879, %s883
          %s885 = smul.addr %s884, 64
          %s886 = scalar_lea.hbm %s3, %s885
          %s887 = sshll.u32 %s875, 4
          %s888 = int_to_ptr.vmem [resolvable:$true] %s887
          %893 = dma.vmem_to_hbm [thread:$0]  %s888, 1024, %s886, %s872, 64, 64, 4
        $region44: #{tpu_custom_call.1} parent=31 // pred_fallthru
          _
      $region32: #{tpu_custom_call.1} parent=5 // pred_fallthru
        _
      %p894 = scmp.le.s32.totalorder 2, %s16
      // Predicated region
      $region45: #{tpu_custom_call.1} parent=5 // pred_check
        %p895 = pneg %p894
      $region46: #{tpu_custom_call.1} parent=5 // pred_check_branch
        %897 = sbr.rel (%p895) target = $region48
      $region47: #{tpu_custom_call.1} parent=5 // pred_region
        %s898 = ssub.s32 %s16, 2
        // Predicated region
        $region49: #{tpu_custom_call.1} parent=47 // pred_check
          %p899 = pneg %p129
        $region50: #{tpu_custom_call.1} parent=47 // pred_check_branch
          %901 = sbr.rel (%p899) target = $region52
        $region51: #{tpu_custom_call.1} parent=47 // pred_region
          %s902 = sand.u32 %s114, 1
          %s903 = scalar_lea.sflag [#allocation4], %s902
          %s904 = sand.u32 %s114, 1
          %s905 = smul.addr %s904, 64
          %s906 = scalar_lea.vmem [#allocation7], %s905
          %907 = dma.done %s903, 1024
        $region52: #{tpu_custom_call.1} parent=47 // pred_fallthru
          _
      $region48: #{tpu_custom_call.1} parent=5 // pred_fallthru
        _
    $region6: #{tpu_custom_call.1} parent=1 // loop_footer
      %s20 = sadd.s32 1, %s16
    $region7: #{tpu_custom_call.1} parent=1 // loop_footer_branch
      %15 = sbr.rel target = $region3
    $region8: #{tpu_custom_call.1} parent=1 // loop_exit
      _
    %908 = vsyncpa [#allocation3], 1
    %s909 = scalar_lea.sflag [#allocation3], 1
    %910 = vsyncpa %s909, 1
    %911 = vsyncpa [#allocation6], 1
    %912 = vsyncpa [#allocation4], 1
    %s913 = scalar_lea.sflag [#allocation4], 1
    %914 = vsyncpa %s913, 1

</llo_original>
